<compile_context>
chip_gen: v6e
topology: v6e:2x2x1
jax: 0.10.0
libtpu: 0.0.40
codegen_flags: <defaults>
</compile_context>

<pallas_src>
import jax
import jax.numpy as jnp
from jax.experimental import pallas as pl
from jax.experimental.pallas import tpu as pltpu


def fusion_kernel(x_ref, w_ref, b_ref, o_ref):
    # x_ref: (V, TB, Din) stacked views (any float dtype)
    # w_ref: (Din, Fp)    bf16 weight, feature axis padded to a lane multiple
    # b_ref: (1, Fp)      f32 bias, pad columns = -1e30 (masks softmax pads)
    # o_ref: (TB, Fp)     softmax over the lane-dense feature axis
    x_sum = jnp.sum(x_ref[...].astype(jnp.float32), axis=0)       # VPU V-way add
    logits = jnp.dot(x_sum.astype(jnp.bfloat16), w_ref[...],
                     preferred_element_type=jnp.float32) + b_ref[...]
    m = jnp.max(logits, axis=-1, keepdims=True)
    e = jnp.exp(logits - m)                        # pad cols: exp(-1e30 - m) == 0
    denom = jnp.sum(e, axis=-1, keepdims=True)
    r = pl.reciprocal(denom, approx=True)          # EUP vrcp (otherwise-idle slot)
    r = r * (2.0 - denom * r)                      # one Newton step -> ~f32 accurate
    o_ref[...] = (e * r).astype(o_ref.dtype)


def prepare_fusion_params(weight, bias):
    """One-time parameter prep (hoisted out of the per-call forward).

    weight: (Din, Dfeat) -- transposed nn.Linear weight; bias: (Dfeat,) or (1, Dfeat).
    Returns (w_bf16_padded, b_f32_padded, Dfeat).
    """
    Din, Dfeat = weight.shape
    Fp = ((Dfeat + 127) // 128) * 128              # lane-dense feature axis
    pad_f = Fp - Dfeat
    w_pad = jnp.pad(weight.astype(jnp.float32),
                    ((0, 0), (0, pad_f))).astype(jnp.bfloat16)
    b2 = jnp.reshape(bias, (1, Dfeat)).astype(jnp.float32)
    b_pad = jnp.pad(b2, ((0, 0), (0, pad_f)), constant_values=-1e30)
    return w_pad, b_pad, Dfeat


def _vmem_budget_bytes():
    # ~75% of physical VMEM, capped at 96 MiB.
    # v5e/v6e: 128 MiB physical -> 96 MiB; v7x: 64 MiB physical -> 48 MiB.
    cap = 128 << 20
    try:
        cap = int(pltpu.get_tpu_info().vmem_capacity_bytes)
    except Exception:
        pass
    return int(min(cap * 3 // 4, 96 << 20))


def fusion_forward(xs_stacked, w_pad, b_pad, dfeat, *, batch_tile=512):
    """xs_stacked: (V, B, Din); w_pad/b_pad/dfeat from prepare_fusion_params."""
    V, B, Din = xs_stacked.shape
    assert w_pad.shape[0] == Din
    Fp = w_pad.shape[1]
    out_dtype = xs_stacked.dtype

    xb = xs_stacked.dtype.itemsize
    ob = jnp.dtype(out_dtype).itemsize
    w_bytes = w_pad.size * w_pad.dtype.itemsize
    b_bytes = b_pad.size * b_pad.dtype.itemsize
    budget = _vmem_budget_bytes()

    def cparams(**kw):
        return pltpu.CompilerParams(vmem_limit_bytes=budget, **kw)

    def cost(rows):
        return pl.CostEstimate(
            flops=2 * rows * Din * Fp + (V - 1) * rows * Din,
            transcendentals=rows * Fp,
            bytes_accessed=V * rows * Din * xb + w_bytes + b_bytes + rows * Fp * ob)

    Bp8 = ((B + 7) // 8) * 8
    small_bytes = V * Bp8 * Din * xb + w_bytes + b_bytes + Bp8 * Fp * ob

    if Bp8 <= batch_tile and small_bytes <= budget // 2:
        # Genuinely tiny problem: single invocation, whole arrays resident in VMEM,
        # no grid => no per-step pipeline overhead, no double-buffering.
        x_in = jnp.pad(xs_stacked, ((0, 0), (0, Bp8 - B), (0, 0)))
        vmem = pl.BlockSpec(memory_space=pltpu.MemorySpace.VMEM)
        out_pad = pl.pallas_call(
            fusion_kernel,
            out_shape=jax.ShapeDtypeStruct((Bp8, Fp), out_dtype),
            in_specs=[vmem, vmem, vmem],
            out_specs=vmem,
            compiler_params=cparams(),
            cost_estimate=cost(Bp8),
        )(x_in, w_pad, b_pad)
        return out_pad[:B, :dfeat]

    # Batch-tiled path: tile over batch (128-aligned for the MXU); weight/bias stay
    # VMEM-resident across steps.
    TB = max(128, (min(batch_tile, max(Bp8, 128)) // 128) * 128)

    def step_bytes(tb):
        return (2 * V * tb * Din * xb          # double-buffered xs block
                + 2 * tb * Fp * ob             # double-buffered out block
                + 2 * (w_bytes + b_bytes))     # resident weight/bias (worst case)

    while TB > 128 and step_bytes(TB) > budget // 2:
        TB -= 128

    Bp = ((B + TB - 1) // TB) * TB
    x_in = jnp.pad(xs_stacked, ((0, 0), (0, Bp - B), (0, 0)))

    def tiled_call(single_buffer_resident):
        resident_kw = {}
        if single_buffer_resident:
            # Weight/bias block index never changes -> no need to double-buffer them.
            resident_kw = dict(pipeline_mode=pl.Buffered(1))
        return pl.pallas_call(
            fusion_kernel,
            out_shape=jax.ShapeDtypeStruct((Bp, Fp), out_dtype),
            grid=(Bp // TB,),
            in_specs=[
                pl.BlockSpec((V, TB, Din), lambda i: (0, i, 0)),
                pl.BlockSpec((Din, Fp), lambda i: (0, 0), **resident_kw),
                pl.BlockSpec((1, Fp), lambda i: (0, 0), **resident_kw),
            ],
            out_specs=pl.BlockSpec((TB, Fp), lambda i: (i, 0)),
            # TODO(synk): on v7x, confirm "parallel" really shards the batch grid
            # across the 2 TensorCores; if not, switch to pltpu.CORE_PARALLEL.
            compiler_params=cparams(dimension_semantics=("parallel",)),
            cost_estimate=cost(Bp),
        )(x_in, w_pad, b_pad)

    try:
        out_pad = tiled_call(True)
    except Exception:
        out_pad = tiled_call(False)   # pipeline_mode not supported -> default buffering
    return out_pad[:B, :dfeat]


if __name__ == "__main__":
    # Small shapes consistent with the module's forward.
    view, batch, input_dim, feature_dim = 3, 8, 32, 16

    key = jax.random.PRNGKey(0)
    k_xs, k_w, k_b = jax.random.split(key, 3)

    # xs: list of `view` tensors, each (batch, input_dim); stacked for the kernel.
    xs_stacked = jax.random.normal(k_xs, (view, batch, input_dim), dtype=jnp.float32)

    # Deterministic Linear params (PyTorch-style uniform init), stored transposed.
    bound = 1.0 / (input_dim ** 0.5)
    weight = jax.random.uniform(k_w, (input_dim, feature_dim),
                                minval=-bound, maxval=bound, dtype=jnp.float32)
    bias = jax.random.uniform(k_b, (1, feature_dim),
                              minval=-bound, maxval=bound, dtype=jnp.float32)

    # One-time parameter prep (hoisted out of the per-call forward).
    w_pad, b_pad, dfeat = prepare_fusion_params(weight, bias)

    # Pure-JAX references.
    def ref_fusion(xs, w, b):                      # exact module semantics (f32)
        return jax.nn.softmax(jnp.sum(xs, axis=0) @ w + b, axis=1)

    def ref_fusion_bf16(xs, w, b):                 # matches the kernel's bf16 MXU feed
        s = jnp.sum(xs.astype(jnp.float32), axis=0).astype(jnp.bfloat16)
        logits = jnp.dot(s, w.astype(jnp.bfloat16),
                         preferred_element_type=jnp.float32) + b
        return jax.nn.softmax(logits, axis=1)

    # Small-batch (no-grid) path.
    out = jax.block_until_ready(fusion_forward(xs_stacked, w_pad, b_pad, dfeat))
    assert out.shape == (batch, feature_dim)
    assert jnp.allclose(out, ref_fusion_bf16(xs_stacked, weight, bias), atol=1e-4), \
        "mismatch vs bf16-matched reference (small path)"
    assert jnp.allclose(out, ref_fusion(xs_stacked, weight, bias), atol=3e-2), \
        "mismatch vs f32 reference (small path)"

    # Batch-tiled (grid) path, kept small/quick by forcing a small batch_tile.
    batch2 = 256
    xs2 = jax.random.normal(jax.random.PRNGKey(1), (view, batch2, input_dim),
                            dtype=jnp.float32)
    out2 = jax.block_until_ready(
        fusion_forward(xs2, w_pad, b_pad, dfeat, batch_tile=128))
    assert out2.shape == (batch2, feature_dim)
    assert jnp.allclose(out2, ref_fusion_bf16(xs2, weight, bias), atol=1e-4), \
        "mismatch vs bf16-matched reference (tiled path)"
    assert jnp.allclose(out2, ref_fusion(xs2, weight, bias), atol=3e-2), \
        "mismatch vs f32 reference (tiled path)"

    print("KERNEL_OK")
</pallas_src>

<mosaic_0001>
module attributes {stable_mosaic.version = 11 : i64} {
  func.func @fusion_kernel(%arg0: memref<3x8x32xf32, #tpu.memory_space<vmem>>, %arg1: memref<32x128xbf16, #tpu.memory_space<vmem>>, %arg2: memref<1x128xf32, #tpu.memory_space<vmem>>, %arg3: memref<8x128xf32, #tpu.memory_space<vmem>>) attributes {dimension_semantics = [], scalar_prefetch = 0 : i64, scratch_operands = 0 : i64, tpu.core_type = #tpu.core_type<tc>} {
    %c0 = arith.constant 0 : index
    %c0_0 = arith.constant 0 : index
    %c0_1 = arith.constant 0 : index
    %0 = vector.load %arg0[%c0, %c0_0, %c0_1] : memref<3x8x32xf32, #tpu.memory_space<vmem>>, vector<3x8x32xf32>
    %cst = arith.constant dense<0.000000e+00> : vector<8x32xf32>
    %1 = vector.multi_reduction <add>, %0, %cst [0] : vector<3x8x32xf32> to vector<8x32xf32>
    %2 = arith.truncf %1 : vector<8x32xf32> to vector<8x32xbf16>
    %c0_2 = arith.constant 0 : index
    %c0_3 = arith.constant 0 : index
    %3 = vector.load %arg1[%c0_2, %c0_3] : memref<32x128xbf16, #tpu.memory_space<vmem>>, vector<32x128xbf16>
    %cst_4 = arith.constant dense<0.000000e+00> : vector<8x128xf32>
    %4 = tpu.matmul %2, %3, %cst_4 {dimension_numbers = #tpu.dot_dimension_numbers<[1], [0], [0], [1], [0, 0, 1, 1], [], []>} : vector<8x32xbf16>, vector<32x128xbf16>, vector<8x128xf32> -> vector<8x128xf32>
    %c0_5 = arith.constant 0 : index
    %c0_6 = arith.constant 0 : index
    %5 = vector.load %arg2[%c0_5, %c0_6] : memref<1x128xf32, #tpu.memory_space<vmem>>, vector<1x128xf32>
    %6 = vector.broadcast %5 : vector<1x128xf32> to vector<8x128xf32>
    %7 = arith.addf %4, %6 : vector<8x128xf32>
    %cst_7 = arith.constant dense<0xFF800000> : vector<8xf32>
    %8 = vector.multi_reduction <maximumf>, %7, %cst_7 [1] : vector<8x128xf32> to vector<8xf32>
    %9 = vector.shape_cast %8 : vector<8xf32> to vector<8x1xf32>
    %10 = vector.broadcast %9 : vector<8x1xf32> to vector<8x128xf32>
    %11 = arith.subf %7, %10 : vector<8x128xf32>
    %12 = math.exp %11 : vector<8x128xf32>
    %cst_8 = arith.constant dense<0.000000e+00> : vector<8xf32>
    %13 = vector.multi_reduction <add>, %12, %cst_8 [1] : vector<8x128xf32> to vector<8xf32>
    %14 = vector.shape_cast %13 : vector<8xf32> to vector<8x1xf32>
    %15 = tpu.reciprocal %14 {approx = true} : vector<8x1xf32> -> vector<8x1xf32>
    %16 = arith.mulf %14, %15 : vector<8x1xf32>
    %cst_9 = arith.constant 2.000000e+00 : f32
    %17 = vector.broadcast %cst_9 : f32 to vector<8x1xf32>
    %18 = arith.subf %17, %16 : vector<8x1xf32>
    %19 = arith.mulf %15, %18 : vector<8x1xf32>
    %20 = vector.broadcast %19 : vector<8x1xf32> to vector<8x128xf32>
    %21 = arith.mulf %12, %20 : vector<8x128xf32>
    %c0_10 = arith.constant 0 : index
    %c0_11 = arith.constant 0 : index
    %22 = vector.load %arg3[%c0_10, %c0_11] : memref<8x128xf32, #tpu.memory_space<vmem>>, vector<8x128xf32>
    tpu.vector_store %arg3[%c0_10, %c0_11], %21 {strides = array<i32>} : memref<8x128xf32, #tpu.memory_space<vmem>>, vector<8x128xf32>,
    return
  }
}

</mosaic_0001>

<llo_original>
// kernel: tpu_custom_call.1
$region0: #{tpu_custom_call.1}
  #allocation0 [shape = 'u32[]', space=smem, size = 0x4, offset = 0x4, fixed_abs, tag = 'smem constant byte address 0x4 - core index']
  #allocation1 [shape = 'u32[144,128]{1,0:T(1,128)}', space=vmem, size = 0x12000, scoped, tag = 'internal scratch']
  %s0 = inlined_call_operand.hbm [shape: f32[3,8,32], index: 0, kind: input, shape index: {}]
  %s1 = inlined_call_operand.hbm [shape: bf16[32,128], index: 1, kind: input, shape index: {}]
  %s2 = inlined_call_operand.vmem [shape: f32[1,128], index: 2, kind: input, shape index: {}]
  %s3 = inlined_call_operand.hbm [shape: f32[8,128], index: 3, kind: output, shape index: {}]
  %s4 = sld [smem:[#allocation0]]
  $region30: #{tpu_custom_call.1} parent=0
    _
  %s6 = ssub.s32 1, %s4
  %s7 = scalar_select 0, %s6, %s4
  $region1: #{tpu_custom_call.1} parent=0
    #allocation2 [shape = 'u8[12288]{0}', space=vmem, size = 0x3000, scoped, tag = 'input window, operand 0, single buffered']
    #allocation3 [shape = 's32[1]{0}', space=sflag, size = 0x4, scoped, tag = 'scoped memory for tpu_custom_call.1']
    #allocation4 [shape = 's32[1]{0}', space=sflag, size = 0x4, scoped, tag = 'scoped memory for tpu_custom_call.1']
    #allocation5 [shape = 'u8[8192]{0}', space=vmem, size = 0x2000, scoped, tag = 'input window, operand 1, single buffered']
    #allocation6 [shape = 's32[1]{0}', space=sflag, size = 0x4, scoped, tag = 'scoped memory for tpu_custom_call.1']
    #allocation7 [shape = 'u8[4096]{0}', space=vmem, size = 0x1000, scoped, tag = 'output window, operand 0, single buffered']
    %8 = vsyncpa [#allocation3], 0
    %9 = vsyncpa [#allocation6], 0
    %10 = vsyncpa [#allocation4], 0
    // Predicated region
    $region2: #{tpu_custom_call.1} parent=1 // pred_check
      _
    $region3: #{tpu_custom_call.1} parent=1 // pred_check_branch
      %12 = sbr.rel (0) target = $region5
    $region4: #{tpu_custom_call.1} parent=1 // pred_region
      %s14 = ssub.s32 384, 384
      %15 = vsyncadd [#allocation3], %s14
      %s16 = sshll.u32 [#allocation2], 4
      %s17 = int_to_ptr.vmem [resolvable:$true] %s16
      %22 = dma.hbm_to_vmem [thread:$0]  %s0, 384, %s17, [#allocation3], 128, 128, 8
    $region5: #{tpu_custom_call.1} parent=1 // pred_fallthru
      _
    // Predicated region
    $region6: #{tpu_custom_call.1} parent=1 // pred_check
      _
    $region7: #{tpu_custom_call.1} parent=1 // pred_check_branch
      %24 = sbr.rel (0) target = $region9
    $region8: #{tpu_custom_call.1} parent=1 // pred_region
      %s26 = ssub.s32 256, 256
      %27 = vsyncadd [#allocation6], %s26
      %s28 = sshll.u32 [#allocation5], 4
      %s29 = int_to_ptr.vmem [resolvable:$true] %s28
      %34 = dma.hbm_to_vmem [thread:$0]  %s1, 256, %s29, [#allocation6], 64, 64, 4
    $region9: #{tpu_custom_call.1} parent=1 // pred_fallthru
      _
    // Predicated region
    $region10: #{tpu_custom_call.1} parent=1 // pred_check
      _
    $region11: #{tpu_custom_call.1} parent=1 // pred_check_branch
      %36 = sbr.rel (0) target = $region13
    $region12: #{tpu_custom_call.1} parent=1 // pred_region
      _
    $region13: #{tpu_custom_call.1} parent=1 // pred_fallthru
      _
    // Predicated region
    $region14: #{tpu_custom_call.1} parent=1 // pred_check
      _
    $region15: #{tpu_custom_call.1} parent=1 // pred_check_branch
      %38 = sbr.rel (0) target = $region17
    $region16: #{tpu_custom_call.1} parent=1 // pred_region
      %39 = dma.done [#allocation3], 384
    $region17: #{tpu_custom_call.1} parent=1 // pred_fallthru
      _
    // Predicated region
    $region18: #{tpu_custom_call.1} parent=1 // pred_check
      _
    $region19: #{tpu_custom_call.1} parent=1 // pred_check_branch
      %41 = sbr.rel (0) target = $region21
    $region20: #{tpu_custom_call.1} parent=1 // pred_region
      %42 = dma.done [#allocation6], 256
    $region21: #{tpu_custom_call.1} parent=1 // pred_fallthru
      _
    %v44 = vld [vmem:[#allocation2] sm:$0xff]
    %v45 = vld [vmem:[#allocation2 + $0x8] sm:$0xff]
    %v46 = vld [vmem:[#allocation2 + $0x10] sm:$0xff]
    %vm47 = vcmask 261120
    %v48 = vsel %vm47, %v44, 0.0
    %v49 = vsel %vm47, %v45, 0.0
    %v50 = vadd.f32 %v48, %v49
    %v51 = vsel %vm47, %v46, 0.0
    %v52 = vadd.f32 %v50, %v51
    %v53 = vpack.c.bf16 %v52, %v52
    %v54 = vld [vmem:[#allocation5] sm:$0xf]
    %v55 = vld [vmem:[#allocation5 + $0x4] sm:$0xf]
    %v56 = vld [vmem:[#allocation5 + $0x8] sm:$0xf]
    %v57 = vld [vmem:[#allocation5 + $0xc] sm:$0xf]
    %v58 = vld [vmem:[%s2] sm:$0x1]
    %v60 = vlaneseq
    %v61 = vshrl.u32 %v60, 7
    %v62 = vsub.s32 0, %v61
    %v63 = vrot.slane %v58, %v62
    %v69 = vunpack.c.l.b16 %v54
    %v70 = vunpack.c.l.b16 %v55
    %v71 = vunpack.c.l.b16 %v56
    %v72 = vunpack.c.l.b16 %v57
    %v73 = vpack.c.b16 %v70, %v69
    %v74 = vpack.c.b16 %v72, %v71
    %v78 = vsel %vm47, %v53, 0
    %80 = vmatprep.subr.bf16.mxu0 0
    %81 = vmatpush1.bf16.msra.mxu0 0
    %82 = vmatprep.subr.bf16.mxu0 0
    %83 = vmatpush1.bf16.msra.mxu0 0
    %84 = vmatprep.subr.bf16.mxu0 0
    %85 = vmatpush1.bf16.msra.mxu0 0
    %86 = vmatprep.subr.bf16.mxu0 0
    %87 = vmatpush1.bf16.msra.mxu0 0
    %88 = vmatprep.subr.bf16.mxu0 0
    %89 = vmatpush1.bf16.msra.mxu0 0
    %90 = vmatprep.subr.bf16.mxu0 0
    %91 = vmatpush1.bf16.msra.mxu0 0
    %92 = vmatprep.subr.bf16.mxu0 0
    %93 = vmatpush1.bf16.msra.mxu0 %v74
    %94 = vmatprep.subr.bf16.mxu0 0
    %95 = vmatpush1.bf16.msra.mxu0 %v73
    %96 = vmatprep.subr.bf16.mxu0 0
    %97 = vmatpush2.bf16.msra.mxu0 0
    %98 = vmatprep.subr.bf16.mxu0 0
    %99 = vmatpush2.bf16.msra.mxu0 0
    %100 = vmatprep.subr.bf16.mxu0 0
    %101 = vmatpush2.bf16.msra.mxu0 0
    %102 = vmatprep.subr.bf16.mxu0 0
    %103 = vmatpush2.bf16.msra.mxu0 0
    %104 = vmatprep.subr.bf16.mxu0 0
    %105 = vmatpush2.bf16.msra.mxu0 0
    %106 = vmatprep.subr.bf16.mxu0 0
    %107 = vmatpush2.bf16.msra.mxu0 0
    %108 = vmatprep.subr.bf16.mxu0 0
    %109 = vmatpush2.bf16.msra.mxu0 0
    %110 = vmatprep.subr.bf16.mxu0 0
    %111 = vmatpush2.bf16.msra.mxu0 0
    %112 = vmatprep.mubr.bf16.mxu0 0
    %113 = vmatmul.mubr.bf16.gmra.mxu0 %v78
    %v114 = vpop.f32.mrf.mxu0
    %v115 = vadd.f32 %v63, %v114
    %v116 = vpop.f32.mrf.mxu0
    %v117 = vpop.f32.mrf.mxu0
    %v118 = vpop.f32.mrf.mxu0
    %119 = vdwg.mxu0
    %120 = vmax.xlane.f32.xlu0 %v115
    %v121 = vpop.xlane.xlu0 %120
    %v122 = vsub.f32 %v115, %v121
    %v123 = vmul.f32 %v122, 1.442695
    %v124 = vpow.pop %v123
    %125 = vadd.xlane.f32.xlu0 %v124
    %v126 = vpop.xlane.xlu0 %125
    %v127 = vrcp.pop %v126
    %v128 = vmul.f32 %v126, %v127
    %v129 = vsub.f32 2.0, %v128
    %v130 = vmul.f32 %v127, %v129
    %v131 = vmul.f32 %v124, %v130
    %132 = vst [vmem:[#allocation7] sm:$0xff] %v131
    // Predicated region
    $region22: #{tpu_custom_call.1} parent=1 // pred_check
      _
    $region23: #{tpu_custom_call.1} parent=1 // pred_check_branch
      %134 = sbr.rel (0) target = $region25
    $region24: #{tpu_custom_call.1} parent=1 // pred_region
      %s136 = ssub.s32 128, 128
      %137 = vsyncadd [#allocation4], %s136
      %s139 = sshll.u32 [#allocation7], 4
      %s140 = int_to_ptr.vmem [resolvable:$true] %s139
      %142 = dma.vmem_to_hbm [thread:$0]  %s140, 128, %s3, [#allocation4]
    $region25: #{tpu_custom_call.1} parent=1 // pred_fallthru
      _
    // Predicated region
    $region26: #{tpu_custom_call.1} parent=1 // pred_check
      _
    $region27: #{tpu_custom_call.1} parent=1 // pred_check_branch
      %144 = sbr.rel (0) target = $region29
    $region28: #{tpu_custom_call.1} parent=1 // pred_region
      %145 = dma.done [#allocation4], 128
    $region29: #{tpu_custom_call.1} parent=1 // pred_fallthru
      _
    %146 = vsyncpa [#allocation3], 1
    %147 = vsyncpa [#allocation6], 1
    %148 = vsyncpa [#allocation4], 1

</llo_original>
